<compile_context>
chip_gen: v5e
topology: v5e:2x2
jax: 0.10.0
libtpu: 0.0.40
codegen_flags: <defaults>
</compile_context>

<pallas_src>
import functools

import jax
import jax.numpy as jnp
from jax.experimental import pallas as pl
from jax.experimental.pallas import tpu as pltpu


def _pad_to(n, m):
    return pl.cdiv(n, m) * m


def _make_mlp_kernel(n_layers):
    """Kernel: whole MLP chain for one batch tile (n_layers matmuls)."""

    def kernel(x_ref, *refs):
        o_ref = refs[-1]
        wb_refs = refs[:-1]
        h = x_ref[...]  # bf16 [tm, size_in]
        for li in range(n_layers):
            w = wb_refs[2 * li][...]       # bf16 [in_p, out_p]
            b = wb_refs[2 * li + 1][...]   # f32  [1, out_p]
            h = jnp.dot(h, w, preferred_element_type=jnp.float32) + b
            if li < n_layers - 1:
                h = jnp.maximum(h, 0.0).astype(jnp.bfloat16)
        o_ref[...] = h.astype(o_ref.dtype)

    return kernel


def _default_num_batch_tiles():
    """2 batch tiles on v7x (2 TensorCores/chip), 1 everywhere else."""
    try:
        kind = jax.devices()[0].device_kind.lower()
    except Exception:  # pragma: no cover
        return 1
    return 2 if "v7" in kind else 1


def prepare_mlp_params(params):
    """One-time padding/casting of (W [in,out] f32, b [1,out] f32) params.

    Hidden feature dims are zero-padded to multiples of 128 lanes; the input
    dim of layer 0 and the output dim of the last layer are left unpadded.
    Weights are cast to bf16 (MXU operands), biases stay f32.
    """
    n = len(params)
    prepared = []
    prev_in_p = params[0][0].shape[0]  # layer-0 input dim, unpadded
    for li, (W, b) in enumerate(params):
        fi, fo = W.shape
        out_p = fo if li == n - 1 else int(_pad_to(fo, 128))
        Wp = jnp.zeros((prev_in_p, out_p), jnp.bfloat16).at[:fi, :fo].set(
            W.astype(jnp.bfloat16))
        bp = jnp.zeros((1, out_p), jnp.float32).at[:, :fo].set(b)
        prepared.append((Wp, bp))
        prev_in_p = out_p
    return tuple(prepared)


@functools.partial(jax.jit, static_argnames=("tm_max", "num_batch_tiles"))
def mlp_forward(x, padded_params, *, tm_max=1024, num_batch_tiles=1):
    """x: [B, size_in] f32; padded_params: output of prepare_mlp_params.

    Returns [B, size_out] f32.
    """
    B, size_in = x.shape
    n_layers = len(padded_params)
    size_out = padded_params[-1][0].shape[1]

    # --- batch tile: num_batch_tiles even steps (1 on v5e/v6e, 2 on v7x) ---
    tm = int(_pad_to(pl.cdiv(B, num_batch_tiles), 8))
    tm = int(min(tm, tm_max))
    B_p = int(_pad_to(B, tm))

    x_p = x.astype(jnp.bfloat16)
    if B_p != B:
        x_p = jnp.zeros((B_p, size_in), jnp.bfloat16).at[:B, :].set(x_p)

    grid = (B_p // tm,)

    flat_args = [x_p]
    # Input block: last dim == full array dim (no 128 padding needed).
    in_specs = [pl.BlockSpec((tm, size_in), lambda i: (i, 0))]
    for (Wp, bp) in padded_params:
        flat_args.append(Wp)
        flat_args.append(bp)
        # Constant index_map -> weights/biases stay VMEM-resident across steps.
        in_specs.append(pl.BlockSpec(Wp.shape, lambda i: (0, 0)))
        in_specs.append(pl.BlockSpec(bp.shape, lambda i: (0, 0)))

    flops = 2 * B_p * sum(int(w.shape[0]) * int(w.shape[1])
                          for (w, _) in padded_params)
    bytes_accessed = (
        int(x_p.size) * 2
        + sum(int(w.size) * 2 + int(b.size) * 4 for (w, b) in padded_params)
        + B_p * size_out * 4)

    # Scoped-VMEM budget from the per-step footprint, with headroom.
    max_hidden = max(int(w.shape[1]) for (w, _) in padded_params)
    weight_bytes = sum(int(w.size) * 2 + int(b.size) * 4
                       for (w, b) in padded_params)
    footprint = (2 * tm * size_in * 2        # x tile, double-buffered bf16
                 + 2 * tm * size_out * 4     # out tile, double-buffered f32
                 + 2 * weight_bytes          # resident weights (2-deep default)
                 + 4 * tm * max_hidden * 4)  # f32/bf16 intermediates headroom
    vmem_limit = int(min(64 << 20, max(2 * footprint, 8 << 20)))

    out = pl.pallas_call(
        _make_mlp_kernel(n_layers),
        out_shape=jax.ShapeDtypeStruct((B_p, size_out), jnp.float32),
        grid_spec=pltpu.PrefetchScalarGridSpec(
            num_scalar_prefetch=0,
            grid=grid,
            in_specs=in_specs,
            # True-width output block (last dim == full array dim): cuts HBM
            # writeback ~16x vs a 128-padded f32 output.
            out_specs=pl.BlockSpec((tm, size_out), lambda i: (i, 0)),
        ),
        compiler_params=pltpu.CompilerParams(
            dimension_semantics=("parallel",),
            vmem_limit_bytes=vmem_limit),
        cost_estimate=pl.CostEstimate(
            flops=flops, transcendentals=0, bytes_accessed=bytes_accessed),
    )(*flat_args)

    if B_p != B:
        out = out[:B]
    return out


def init_mlp_params(key, size_in, size_out, features=(64, 64, 64, 64)):
    """Deterministic init mimicking PyTorch nn.Linear default U[-1/sqrt(fan_in), +]."""
    dims = [size_in] + list(features) + [size_out]
    params = []
    for i in range(len(dims) - 1):
        fan_in, fan_out = dims[i], dims[i + 1]
        key, kw, kb = jax.random.split(key, 3)
        bound = 1.0 / jnp.sqrt(jnp.float32(fan_in))
        W = jax.random.uniform(kw, (fan_in, fan_out), jnp.float32, -bound, bound)
        b = jax.random.uniform(kb, (1, fan_out), jnp.float32, -bound, bound)
        params.append((W, b))
    return params


def mlp_reference(x, params):
    """Plain-JAX f32 reference (eval-mode dropout == identity)."""
    h = x
    for i, (W, b) in enumerate(params):
        h = h @ W + b
        if i < len(params) - 1:
            h = jnp.maximum(h, 0.0)
    return h


if __name__ == "__main__":
    key = jax.random.PRNGKey(0)
    B, size_in, size_out = 16, 32, 8
    features = (64, 64, 64, 64)

    key, kx = jax.random.split(key)
    x = jax.random.normal(kx, (B, size_in), jnp.float32)
    params = init_mlp_params(key, size_in, size_out, features)

    # One-time weight prep (padding + bf16 cast) hoisted out of the forward path.
    padded_params = prepare_mlp_params(params)
    n_tiles = _default_num_batch_tiles()  # 2 on v7x (2 TCs), else 1

    out = mlp_forward(x, padded_params, num_batch_tiles=n_tiles)
    out = jax.block_until_ready(out)

    ref = mlp_reference(x, params)
    assert out.shape == (B, size_out), out.shape
    # bf16 MXU operands (f32 accumulation) -> looser tolerance than pure f32.
    assert jnp.allclose(out, ref, atol=5e-2, rtol=5e-2), "mismatch vs reference"

    print("KERNEL_OK")
</pallas_src>

<mosaic_0001>
module attributes {stable_mosaic.version = 11 : i64} {
  func.func @kernel(%arg0: i32, %arg1: memref<16x32xbf16, #tpu.memory_space<vmem>>, %arg2: memref<32x128xbf16, #tpu.memory_space<vmem>>, %arg3: memref<1x128xf32, #tpu.memory_space<vmem>>, %arg4: memref<128x128xbf16, #tpu.memory_space<vmem>>, %arg5: memref<1x128xf32, #tpu.memory_space<vmem>>, %arg6: memref<128x128xbf16, #tpu.memory_space<vmem>>, %arg7: memref<1x128xf32, #tpu.memory_space<vmem>>, %arg8: memref<128x128xbf16, #tpu.memory_space<vmem>>, %arg9: memref<1x128xf32, #tpu.memory_space<vmem>>, %arg10: memref<128x8xbf16, #tpu.memory_space<vmem>>, %arg11: memref<1x8xf32, #tpu.memory_space<vmem>>, %arg12: memref<16x8xf32, #tpu.memory_space<vmem>>) attributes {dimension_semantics = [#tpu.dimension_semantics<parallel>], iteration_bounds = array<i64: 1>, scalar_prefetch = 0 : i64, scratch_operands = 0 : i64, tpu.core_type = #tpu.core_type<tc>, window_params = [{transform_indices = @transform_0, window_bounds = array<i64: 16, 32>}, {pipeline_mode = #tpu.pipeline_mode<synchronous>, transform_indices = @transform_1, window_bounds = array<i64: 32, 128>}, {pipeline_mode = #tpu.pipeline_mode<synchronous>, transform_indices = @transform_2, window_bounds = array<i64: 1, 128>}, {pipeline_mode = #tpu.pipeline_mode<synchronous>, transform_indices = @transform_3, window_bounds = array<i64: 128, 128>}, {pipeline_mode = #tpu.pipeline_mode<synchronous>, transform_indices = @transform_4, window_bounds = array<i64: 1, 128>}, {pipeline_mode = #tpu.pipeline_mode<synchronous>, transform_indices = @transform_5, window_bounds = array<i64: 128, 128>}, {pipeline_mode = #tpu.pipeline_mode<synchronous>, transform_indices = @transform_6, window_bounds = array<i64: 1, 128>}, {pipeline_mode = #tpu.pipeline_mode<synchronous>, transform_indices = @transform_7, window_bounds = array<i64: 128, 128>}, {pipeline_mode = #tpu.pipeline_mode<synchronous>, transform_indices = @transform_8, window_bounds = array<i64: 1, 128>}, {pipeline_mode = #tpu.pipeline_mode<synchronous>, transform_indices = @transform_9, window_bounds = array<i64: 128, 8>}, {pipeline_mode = #tpu.pipeline_mode<synchronous>, transform_indices = @transform_10, window_bounds = array<i64: 1, 8>}, {transform_indices = @transform_11, window_bounds = array<i64: 16, 8>}]} {
    %c0 = arith.constant 0 : index
    %c0_0 = arith.constant 0 : index
    %0 = vector.load %arg1[%c0, %c0_0] : memref<16x32xbf16, #tpu.memory_space<vmem>>, vector<16x32xbf16>
    %c0_1 = arith.constant 0 : index
    %c0_2 = arith.constant 0 : index
    %1 = vector.load %arg2[%c0_1, %c0_2] : memref<32x128xbf16, #tpu.memory_space<vmem>>, vector<32x128xbf16>
    %c0_3 = arith.constant 0 : index
    %c0_4 = arith.constant 0 : index
    %2 = vector.load %arg3[%c0_3, %c0_4] : memref<1x128xf32, #tpu.memory_space<vmem>>, vector<1x128xf32>
    %cst = arith.constant dense<0.000000e+00> : vector<16x128xf32>
    %3 = tpu.matmul %0, %1, %cst {dimension_numbers = #tpu.dot_dimension_numbers<[1], [0], [0], [1], [0, 0, 1, 1], [], []>} : vector<16x32xbf16>, vector<32x128xbf16>, vector<16x128xf32> -> vector<16x128xf32>
    %4 = vector.broadcast %2 : vector<1x128xf32> to vector<16x128xf32>
    %5 = arith.addf %3, %4 : vector<16x128xf32>
    %cst_5 = arith.constant 0.000000e+00 : f32
    %6 = vector.broadcast %cst_5 : f32 to vector<16x128xf32>
    %7 = arith.maximumf %5, %6 : vector<16x128xf32>
    %8 = arith.truncf %7 : vector<16x128xf32> to vector<16x128xbf16>
    %c0_6 = arith.constant 0 : index
    %c0_7 = arith.constant 0 : index
    %9 = vector.load %arg4[%c0_6, %c0_7] : memref<128x128xbf16, #tpu.memory_space<vmem>>, vector<128x128xbf16>
    %c0_8 = arith.constant 0 : index
    %c0_9 = arith.constant 0 : index
    %10 = vector.load %arg5[%c0_8, %c0_9] : memref<1x128xf32, #tpu.memory_space<vmem>>, vector<1x128xf32>
    %cst_10 = arith.constant dense<0.000000e+00> : vector<16x128xf32>
    %11 = tpu.matmul %8, %9, %cst_10 {dimension_numbers = #tpu.dot_dimension_numbers<[1], [0], [0], [1], [0, 0, 1, 1], [], []>} : vector<16x128xbf16>, vector<128x128xbf16>, vector<16x128xf32> -> vector<16x128xf32>
    %12 = vector.broadcast %10 : vector<1x128xf32> to vector<16x128xf32>
    %13 = arith.addf %11, %12 : vector<16x128xf32>
    %cst_11 = arith.constant 0.000000e+00 : f32
    %14 = vector.broadcast %cst_11 : f32 to vector<16x128xf32>
    %15 = arith.maximumf %13, %14 : vector<16x128xf32>
    %16 = arith.truncf %15 : vector<16x128xf32> to vector<16x128xbf16>
    %c0_12 = arith.constant 0 : index
    %c0_13 = arith.constant 0 : index
    %17 = vector.load %arg6[%c0_12, %c0_13] : memref<128x128xbf16, #tpu.memory_space<vmem>>, vector<128x128xbf16>
    %c0_14 = arith.constant 0 : index
    %c0_15 = arith.constant 0 : index
    %18 = vector.load %arg7[%c0_14, %c0_15] : memref<1x128xf32, #tpu.memory_space<vmem>>, vector<1x128xf32>
    %cst_16 = arith.constant dense<0.000000e+00> : vector<16x128xf32>
    %19 = tpu.matmul %16, %17, %cst_16 {dimension_numbers = #tpu.dot_dimension_numbers<[1], [0], [0], [1], [0, 0, 1, 1], [], []>} : vector<16x128xbf16>, vector<128x128xbf16>, vector<16x128xf32> -> vector<16x128xf32>
    %20 = vector.broadcast %18 : vector<1x128xf32> to vector<16x128xf32>
    %21 = arith.addf %19, %20 : vector<16x128xf32>
    %cst_17 = arith.constant 0.000000e+00 : f32
    %22 = vector.broadcast %cst_17 : f32 to vector<16x128xf32>
    %23 = arith.maximumf %21, %22 : vector<16x128xf32>
    %24 = arith.truncf %23 : vector<16x128xf32> to vector<16x128xbf16>
    %c0_18 = arith.constant 0 : index
    %c0_19 = arith.constant 0 : index
    %25 = vector.load %arg8[%c0_18, %c0_19] : memref<128x128xbf16, #tpu.memory_space<vmem>>, vector<128x128xbf16>
    %c0_20 = arith.constant 0 : index
    %c0_21 = arith.constant 0 : index
    %26 = vector.load %arg9[%c0_20, %c0_21] : memref<1x128xf32, #tpu.memory_space<vmem>>, vector<1x128xf32>
    %cst_22 = arith.constant dense<0.000000e+00> : vector<16x128xf32>
    %27 = tpu.matmul %24, %25, %cst_22 {dimension_numbers = #tpu.dot_dimension_numbers<[1], [0], [0], [1], [0, 0, 1, 1], [], []>} : vector<16x128xbf16>, vector<128x128xbf16>, vector<16x128xf32> -> vector<16x128xf32>
    %28 = vector.broadcast %26 : vector<1x128xf32> to vector<16x128xf32>
    %29 = arith.addf %27, %28 : vector<16x128xf32>
    %cst_23 = arith.constant 0.000000e+00 : f32
    %30 = vector.broadcast %cst_23 : f32 to vector<16x128xf32>
    %31 = arith.maximumf %29, %30 : vector<16x128xf32>
    %32 = arith.truncf %31 : vector<16x128xf32> to vector<16x128xbf16>
    %c0_24 = arith.constant 0 : index
    %c0_25 = arith.constant 0 : index
    %33 = vector.load %arg10[%c0_24, %c0_25] : memref<128x8xbf16, #tpu.memory_space<vmem>>, vector<128x8xbf16>
    %c0_26 = arith.constant 0 : index
    %c0_27 = arith.constant 0 : index
    %34 = vector.load %arg11[%c0_26, %c0_27] : memref<1x8xf32, #tpu.memory_space<vmem>>, vector<1x8xf32>
    %cst_28 = arith.constant dense<0.000000e+00> : vector<16x8xf32>
    %35 = tpu.matmul %32, %33, %cst_28 {dimension_numbers = #tpu.dot_dimension_numbers<[1], [0], [0], [1], [0, 0, 1, 1], [], []>} : vector<16x128xbf16>, vector<128x8xbf16>, vector<16x8xf32> -> vector<16x8xf32>
    %36 = vector.broadcast %34 : vector<1x8xf32> to vector<16x8xf32>
    %37 = arith.addf %35, %36 : vector<16x8xf32>
    %c0_29 = arith.constant 0 : index
    %c0_30 = arith.constant 0 : index
    %38 = vector.load %arg12[%c0_29, %c0_30] : memref<16x8xf32, #tpu.memory_space<vmem>>, vector<16x8xf32>
    tpu.vector_store %arg12[%c0_29, %c0_30], %37 {strides = array<i32>} : memref<16x8xf32, #tpu.memory_space<vmem>>, vector<16x8xf32>,
    return
  }
  func.func @transform_0(%arg0: i32) -> (i32, i32) {
    %c0_i32 = arith.constant 0 : i32
    %c0_i32_0 = arith.constant 0 : i32
    return %arg0, %c0_i32 : i32, i32
  }
  func.func @transform_1(%arg0: i32) -> (i32, i32) {
    %c0_i32 = arith.constant 0 : i32
    %c0_i32_0 = arith.constant 0 : i32
    %c0_i32_1 = arith.constant 0 : i32
    return %c0_i32, %c0_i32_0 : i32, i32
  }
  func.func @transform_2(%arg0: i32) -> (i32, i32) {
    %c0_i32 = arith.constant 0 : i32
    %c0_i32_0 = arith.constant 0 : i32
    %c0_i32_1 = arith.constant 0 : i32
    return %c0_i32, %c0_i32_0 : i32, i32
  }
  func.func @transform_3(%arg0: i32) -> (i32, i32) {
    %c0_i32 = arith.constant 0 : i32
    %c0_i32_0 = arith.constant 0 : i32
    %c0_i32_1 = arith.constant 0 : i32
    return %c0_i32, %c0_i32_0 : i32, i32
  }
  func.func @transform_4(%arg0: i32) -> (i32, i32) {
    %c0_i32 = arith.constant 0 : i32
    %c0_i32_0 = arith.constant 0 : i32
    %c0_i32_1 = arith.constant 0 : i32
    return %c0_i32, %c0_i32_0 : i32, i32
  }
  func.func @transform_5(%arg0: i32) -> (i32, i32) {
    %c0_i32 = arith.constant 0 : i32
    %c0_i32_0 = arith.constant 0 : i32
    %c0_i32_1 = arith.constant 0 : i32
    return %c0_i32, %c0_i32_0 : i32, i32
  }
  func.func @transform_6(%arg0: i32) -> (i32, i32) {
    %c0_i32 = arith.constant 0 : i32
    %c0_i32_0 = arith.constant 0 : i32
    %c0_i32_1 = arith.constant 0 : i32
    return %c0_i32, %c0_i32_0 : i32, i32
  }
  func.func @transform_7(%arg0: i32) -> (i32, i32) {
    %c0_i32 = arith.constant 0 : i32
    %c0_i32_0 = arith.constant 0 : i32
    %c0_i32_1 = arith.constant 0 : i32
    return %c0_i32, %c0_i32_0 : i32, i32
  }
  func.func @transform_8(%arg0: i32) -> (i32, i32) {
    %c0_i32 = arith.constant 0 : i32
    %c0_i32_0 = arith.constant 0 : i32
    %c0_i32_1 = arith.constant 0 : i32
    return %c0_i32, %c0_i32_0 : i32, i32
  }
  func.func @transform_9(%arg0: i32) -> (i32, i32) {
    %c0_i32 = arith.constant 0 : i32
    %c0_i32_0 = arith.constant 0 : i32
    %c0_i32_1 = arith.constant 0 : i32
    return %c0_i32, %c0_i32_0 : i32, i32
  }
  func.func @transform_10(%arg0: i32) -> (i32, i32) {
    %c0_i32 = arith.constant 0 : i32
    %c0_i32_0 = arith.constant 0 : i32
    %c0_i32_1 = arith.constant 0 : i32
    return %c0_i32, %c0_i32_0 : i32, i32
  }
  func.func @transform_11(%arg0: i32) -> (i32, i32) {
    %c0_i32 = arith.constant 0 : i32
    %c0_i32_0 = arith.constant 0 : i32
    return %arg0, %c0_i32 : i32, i32
  }
}

</mosaic_0001>

<llo_original>
// kernel: mlp_forward.1
$region0: #{mlp_forward.1}
  #allocation0 [shape = 'u32[]', space=smem, size = 0x4, offset = 0x4, fixed_abs, tag = 'smem constant byte address 0x4 - core index']
  #allocation1 [shape = 'u32[72,128]{1,0:T(1,128)}', space=vmem, size = 0x9000, scoped, tag = 'internal scratch']
  %s0 = inlined_call_operand.vmem [shape: bf16[16,32], index: 0, kind: input, shape index: {}]
  %s1 = inlined_call_operand.vmem [shape: bf16[32,128], index: 1, kind: input, shape index: {}]
  %s2 = inlined_call_operand.vmem [shape: f32[1,128], index: 2, kind: input, shape index: {}]
  %s3 = inlined_call_operand.vmem [shape: bf16[128,128], index: 3, kind: input, shape index: {}]
  %s4 = inlined_call_operand.vmem [shape: f32[1,128], index: 4, kind: input, shape index: {}]
  %s5 = inlined_call_operand.hbm [shape: bf16[128,128], index: 5, kind: input, shape index: {}]
  %s6 = inlined_call_operand.vmem [shape: f32[1,128], index: 6, kind: input, shape index: {}]
  %s7 = inlined_call_operand.hbm [shape: bf16[128,128], index: 7, kind: input, shape index: {}]
  %s8 = inlined_call_operand.vmem [shape: f32[1,128], index: 8, kind: input, shape index: {}]
  %s9 = inlined_call_operand.vmem [shape: bf16[128,8], index: 9, kind: input, shape index: {}]
  %s10 = inlined_call_operand.vmem [shape: f32[1,8], index: 10, kind: input, shape index: {}]
  %s11 = inlined_call_operand.vmem [shape: f32[16,8], index: 11, kind: output, shape index: {}]
  %s12 = sld [smem:[#allocation0]]
  $region62: #{mlp_forward.1} parent=0
    _
  %s14 = ssub.s32 1, %s12
  %s15 = scalar_select 0, %s14, %s12
  $region1: #{mlp_forward.1} parent=0
    #allocation2 [shape = 'u8[32768]{0}', space=vmem, size = 0x8000, scoped, tag = 'input window, operand 5, single buffered']
    #allocation3 [shape = 's32[1]{0}', space=sflag, size = 0x4, scoped, tag = 'scoped memory for mlp_forward.1']
    #allocation4 [shape = 'u8[32768]{0}', space=vmem, size = 0x8000, scoped, tag = 'input window, operand 7, single buffered']
    #allocation5 [shape = 's32[1]{0}', space=sflag, size = 0x4, scoped, tag = 'scoped memory for mlp_forward.1']
    %16 = vsyncpa [#allocation3], 0
    %17 = vsyncpa [#allocation5], 0
    // Predicated region
    $region2: #{mlp_forward.1} parent=1 // pred_check
      _
    $region3: #{mlp_forward.1} parent=1 // pred_check_branch
      %19 = sbr.rel (0) target = $region5
    $region4: #{mlp_forward.1} parent=1 // pred_region
      _
    $region5: #{mlp_forward.1} parent=1 // pred_fallthru
      _
    // Predicated region
    $region6: #{mlp_forward.1} parent=1 // pred_check
      _
    $region7: #{mlp_forward.1} parent=1 // pred_check_branch
      %21 = sbr.rel (0) target = $region9
    $region8: #{mlp_forward.1} parent=1 // pred_region
      _
    $region9: #{mlp_forward.1} parent=1 // pred_fallthru
      _
    // Predicated region
    $region10: #{mlp_forward.1} parent=1 // pred_check
      _
    $region11: #{mlp_forward.1} parent=1 // pred_check_branch
      %23 = sbr.rel (0) target = $region13
    $region12: #{mlp_forward.1} parent=1 // pred_region
      _
    $region13: #{mlp_forward.1} parent=1 // pred_fallthru
      _
    // Predicated region
    $region14: #{mlp_forward.1} parent=1 // pred_check
      _
    $region15: #{mlp_forward.1} parent=1 // pred_check_branch
      %25 = sbr.rel (0) target = $region17
    $region16: #{mlp_forward.1} parent=1 // pred_region
      _
    $region17: #{mlp_forward.1} parent=1 // pred_fallthru
      _
    // Predicated region
    $region18: #{mlp_forward.1} parent=1 // pred_check
      _
    $region19: #{mlp_forward.1} parent=1 // pred_check_branch
      %27 = sbr.rel (0) target = $region21
    $region20: #{mlp_forward.1} parent=1 // pred_region
      _
    $region21: #{mlp_forward.1} parent=1 // pred_fallthru
      _
    // Predicated region
    $region22: #{mlp_forward.1} parent=1 // pred_check
      _
    $region23: #{mlp_forward.1} parent=1 // pred_check_branch
      %29 = sbr.rel (0) target = $region25
    $region24: #{mlp_forward.1} parent=1 // pred_region
      %31 = vsyncadd [#allocation3], 0
      %s32 = sshll.u32 %s5, 4
      %s33 = int_to_ptr.hbm [resolvable:$true] %s32
      %s34 = sshll.u32 [#allocation2], 4
      %s35 = int_to_ptr.vmem [resolvable:$true] %s34
      %40 = dma.hbm_to_vmem [thread:$0]  %s33, 1024, %s35, [#allocation3], 64, 64, 4
    $region25: #{mlp_forward.1} parent=1 // pred_fallthru
      _
    // Predicated region
    $region26: #{mlp_forward.1} parent=1 // pred_check
      _
    $region27: #{mlp_forward.1} parent=1 // pred_check_branch
      %42 = sbr.rel (0) target = $region29
    $region28: #{mlp_forward.1} parent=1 // pred_region
      _
    $region29: #{mlp_forward.1} parent=1 // pred_fallthru
      _
    // Predicated region
    $region30: #{mlp_forward.1} parent=1 // pred_check
      _
    $region31: #{mlp_forward.1} parent=1 // pred_check_branch
      %44 = sbr.rel (0) target = $region33
    $region32: #{mlp_forward.1} parent=1 // pred_region
      %46 = vsyncadd [#allocation5], 0
      %s47 = sshll.u32 %s7, 4
      %s48 = int_to_ptr.hbm [resolvable:$true] %s47
      %s49 = sshll.u32 [#allocation4], 4
      %s50 = int_to_ptr.vmem [resolvable:$true] %s49
      %55 = dma.hbm_to_vmem [thread:$0]  %s48, 1024, %s50, [#allocation5], 64, 64, 4
    $region33: #{mlp_forward.1} parent=1 // pred_fallthru
      _
    // Predicated region
    $region34: #{mlp_forward.1} parent=1 // pred_check
      _
    $region35: #{mlp_forward.1} parent=1 // pred_check_branch
      %57 = sbr.rel (0) target = $region37
    $region36: #{mlp_forward.1} parent=1 // pred_region
      _
    $region37: #{mlp_forward.1} parent=1 // pred_fallthru
      _
    // Predicated region
    $region38: #{mlp_forward.1} parent=1 // pred_check
      _
    $region39: #{mlp_forward.1} parent=1 // pred_check_branch
      %59 = sbr.rel (0) target = $region41
    $region40: #{mlp_forward.1} parent=1 // pred_region
      _
    $region41: #{mlp_forward.1} parent=1 // pred_fallthru
      _
    // Predicated region
    $region42: #{mlp_forward.1} parent=1 // pred_check
      _
    $region43: #{mlp_forward.1} parent=1 // pred_check_branch
      %61 = sbr.rel (0) target = $region45
    $region44: #{mlp_forward.1} parent=1 // pred_region
      _
    $region45: #{mlp_forward.1} parent=1 // pred_fallthru
      _
    // Predicated region
    $region46: #{mlp_forward.1} parent=1 // pred_check
      _
    $region47: #{mlp_forward.1} parent=1 // pred_check_branch
      %63 = sbr.rel (0) target = $region49
    $region48: #{mlp_forward.1} parent=1 // pred_region
      %65 = dma.done [#allocation3], 1024
    $region49: #{mlp_forward.1} parent=1 // pred_fallthru
      _
    // Predicated region
    $region50: #{mlp_forward.1} parent=1 // pred_check
      _
    $region51: #{mlp_forward.1} parent=1 // pred_check_branch
      %67 = sbr.rel (0) target = $region53
    $region52: #{mlp_forward.1} parent=1 // pred_region
      %69 = dma.done [#allocation5], 1024
    $region53: #{mlp_forward.1} parent=1 // pred_fallthru
      _
    %v71 = vld [vmem:[%s0] sm:$0xf]
    %v72 = vld [vmem:[%s0 + $0x4] sm:$0xf]
    %v73 = vld [vmem:[%s1] sm:$0xf]
    %v74 = vld [vmem:[%s1 + $0x4] sm:$0xf]
    %v75 = vld [vmem:[%s1 + $0x8] sm:$0xf]
    %v76 = vld [vmem:[%s1 + $0xc] sm:$0xf]
    %v77 = vld [vmem:[%s2] sm:$0x1]
    %v79 = vperm.slane %v77, 0
    %v83 = vunpack.c.l.b16 %v71
    %v84 = vunpack.c.l.b16 %v72
    %v85 = vpack.c.b16 %v84, %v83
    %v90 = vunpack.c.l.b16 %v73
    %v91 = vunpack.c.l.b16 %v74
    %v92 = vunpack.c.l.b16 %v75
    %v93 = vunpack.c.l.b16 %v76
    %v94 = vpack.c.b16 %v91, %v90
    %v95 = vpack.c.b16 %v93, %v92
    %vm98 = vcmask 261120
    %v100 = vsel %vm98, %v85, 0
    %102 = vmatpush.bf16.msra.mxu0 0
    %103 = vmatpush.bf16.msra.mxu0 0
    %104 = vmatpush.bf16.msra.mxu0 0
    %105 = vmatpush.bf16.msra.mxu0 0
    %106 = vmatpush.bf16.msra.mxu0 0
    %107 = vmatpush.bf16.msra.mxu0 0
    %108 = vmatpush.bf16.msra.mxu0 %v95
    %109 = vmatpush.bf16.msra.mxu0 %v94
    %110 = vmatmul.bf16.gmra.mxu0 %v100
    %v111 = vpop.f32.mrf.mxu0
    %v112 = vadd.f32 %v79, %v111
    %v113 = vpop.f32.mrf.mxu0
    %v114 = vadd.f32 %v79, %v113
    %115 = vdwg.mxu0
    %v116 = vmax.f32 %v112, 0.0
    %v117 = vmax.f32 %v114, 0.0
    %v118 = vpack.c.bf16 %v117, %v116
    %v119 = vld [vmem:[%s3] sm:$0xf]
    %v120 = vld [vmem:[%s3 + $0x4] sm:$0xf]
    %v121 = vld [vmem:[%s3 + $0x8] sm:$0xf]
    %v122 = vld [vmem:[%s3 + $0xc] sm:$0xf]
    %v123 = vld [vmem:[%s3 + $0x10] sm:$0xf]
    %v124 = vld [vmem:[%s3 + $0x14] sm:$0xf]
    %v125 = vld [vmem:[%s3 + $0x18] sm:$0xf]
    %v126 = vld [vmem:[%s3 + $0x1c] sm:$0xf]
    %v127 = vld [vmem:[%s3 + $0x20] sm:$0xf]
    %v128 = vld [vmem:[%s3 + $0x24] sm:$0xf]
    %v129 = vld [vmem:[%s3 + $0x28] sm:$0xf]
    %v130 = vld [vmem:[%s3 + $0x2c] sm:$0xf]
    %v131 = vld [vmem:[%s3 + $0x30] sm:$0xf]
    %v132 = vld [vmem:[%s3 + $0x34] sm:$0xf]
    %v133 = vld [vmem:[%s3 + $0x38] sm:$0xf]
    %v134 = vld [vmem:[%s3 + $0x3c] sm:$0xf]
    %v135 = vld [vmem:[%s4] sm:$0x1]
    %v137 = vperm.slane %v135, 0
    %v155 = vunpack.c.l.b16 %v119
    %v156 = vunpack.c.l.b16 %v120
    %v157 = vunpack.c.l.b16 %v121
    %v158 = vunpack.c.l.b16 %v122
    %v159 = vunpack.c.l.b16 %v123
    %v160 = vunpack.c.l.b16 %v124
    %v161 = vunpack.c.l.b16 %v125
    %v162 = vunpack.c.l.b16 %v126
    %v163 = vunpack.c.l.b16 %v127
    %v164 = vunpack.c.l.b16 %v128
    %v165 = vunpack.c.l.b16 %v129
    %v166 = vunpack.c.l.b16 %v130
    %v167 = vunpack.c.l.b16 %v131
    %v168 = vunpack.c.l.b16 %v132
    %v169 = vunpack.c.l.b16 %v133
    %v170 = vunpack.c.l.b16 %v134
    %v171 = vpack.c.b16 %v156, %v155
    %v172 = vpack.c.b16 %v158, %v157
    %v173 = vpack.c.b16 %v160, %v159
    %v174 = vpack.c.b16 %v162, %v161
    %v175 = vpack.c.b16 %v164, %v163
    %v176 = vpack.c.b16 %v166, %v165
    %v177 = vpack.c.b16 %v168, %v167
    %v178 = vpack.c.b16 %v170, %v169
    %187 = vmatpush.bf16.msra.mxu0 %v178
    %188 = vmatpush.bf16.msra.mxu0 %v177
    %189 = vmatpush.bf16.msra.mxu0 %v176
    %190 = vmatpush.bf16.msra.mxu0 %v175
    %191 = vmatpush.bf16.msra.mxu0 %v174
    %192 = vmatpush.bf16.msra.mxu0 %v173
    %193 = vmatpush.bf16.msra.mxu0 %v172
    %194 = vmatpush.bf16.msra.mxu0 %v171
    %195 = vmatmul.bf16.gmra.mxu0 %v118
    %v196 = vpop.f32.mrf.mxu0
    %v197 = vadd.f32 %v137, %v196
    %v198 = vpop.f32.mrf.mxu0
    %v199 = vadd.f32 %v137, %v198
    %200 = vdwg.mxu0
    %v201 = vmax.f32 %v197, 0.0
    %v202 = vmax.f32 %v199, 0.0
    %v203 = vpack.c.bf16 %v202, %v201
    %v204 = vld [vmem:[#allocation2] sm:$0xf]
    %v205 = vld [vmem:[#allocation2 + $0x4] sm:$0xf]
    %v206 = vld [vmem:[#allocation2 + $0x8] sm:$0xf]
    %v207 = vld [vmem:[#allocation2 + $0xc] sm:$0xf]
    %v208 = vld [vmem:[#allocation2 + $0x10] sm:$0xf]
    %v209 = vld [vmem:[#allocation2 + $0x14] sm:$0xf]
    %v210 = vld [vmem:[#allocation2 + $0x18] sm:$0xf]
    %v211 = vld [vmem:[#allocation2 + $0x1c] sm:$0xf]
    %v212 = vld [vmem:[#allocation2 + $0x20] sm:$0xf]
    %v213 = vld [vmem:[#allocation2 + $0x24] sm:$0xf]
    %v214 = vld [vmem:[#allocation2 + $0x28] sm:$0xf]
    %v215 = vld [vmem:[#allocation2 + $0x2c] sm:$0xf]
    %v216 = vld [vmem:[#allocation2 + $0x30] sm:$0xf]
    %v217 = vld [vmem:[#allocation2 + $0x34] sm:$0xf]
    %v218 = vld [vmem:[#allocation2 + $0x38] sm:$0xf]
    %v219 = vld [vmem:[#allocation2 + $0x3c] sm:$0xf]
    %v220 = vld [vmem:[%s6] sm:$0x1]
    %v222 = vperm.slane %v220, 0
    %v240 = vunpack.c.l.b16 %v204
    %v241 = vunpack.c.l.b16 %v205
    %v242 = vunpack.c.l.b16 %v206
    %v243 = vunpack.c.l.b16 %v207
    %v244 = vunpack.c.l.b16 %v208
    %v245 = vunpack.c.l.b16 %v209
    %v246 = vunpack.c.l.b16 %v210
    %v247 = vunpack.c.l.b16 %v211
    %v248 = vunpack.c.l.b16 %v212
    %v249 = vunpack.c.l.b16 %v213
    %v250 = vunpack.c.l.b16 %v214
    %v251 = vunpack.c.l.b16 %v215
    %v252 = vunpack.c.l.b16 %v216
    %v253 = vunpack.c.l.b16 %v217
    %v254 = vunpack.c.l.b16 %v218
    %v255 = vunpack.c.l.b16 %v219
    %v256 = vpack.c.b16 %v241, %v240
    %v257 = vpack.c.b16 %v243, %v242
    %v258 = vpack.c.b16 %v245, %v244
    %v259 = vpack.c.b16 %v247, %v246
    %v260 = vpack.c.b16 %v249, %v248
    %v261 = vpack.c.b16 %v251, %v250
    %v262 = vpack.c.b16 %v253, %v252
    %v263 = vpack.c.b16 %v255, %v254
    %272 = vmatpush.bf16.msra.mxu0 %v263
    %273 = vmatpush.bf16.msra.mxu0 %v262
    %274 = vmatpush.bf16.msra.mxu0 %v261
    %275 = vmatpush.bf16.msra.mxu0 %v260
    %276 = vmatpush.bf16.msra.mxu0 %v259
    %277 = vmatpush.bf16.msra.mxu0 %v258
    %278 = vmatpush.bf16.msra.mxu0 %v257
    %279 = vmatpush.bf16.msra.mxu0 %v256
    %280 = vmatmul.bf16.gmra.mxu0 %v203
    %v281 = vpop.f32.mrf.mxu0
    %v282 = vadd.f32 %v222, %v281
    %v283 = vpop.f32.mrf.mxu0
    %v284 = vadd.f32 %v222, %v283
    %285 = vdwg.mxu0
    %v286 = vmax.f32 %v282, 0.0
    %v287 = vmax.f32 %v284, 0.0
    %v288 = vpack.c.bf16 %v287, %v286
    %v289 = vld [vmem:[#allocation4] sm:$0xf]
    %v290 = vld [vmem:[#allocation4 + $0x4] sm:$0xf]
    %v291 = vld [vmem:[#allocation4 + $0x8] sm:$0xf]
    %v292 = vld [vmem:[#allocation4 + $0xc] sm:$0xf]
    %v293 = vld [vmem:[#allocation4 + $0x10] sm:$0xf]
    %v294 = vld [vmem:[#allocation4 + $0x14] sm:$0xf]
    %v295 = vld [vmem:[#allocation4 + $0x18] sm:$0xf]
    %v296 = vld [vmem:[#allocation4 + $0x1c] sm:$0xf]
    %v297 = vld [vmem:[#allocation4 + $0x20] sm:$0xf]
    %v298 = vld [vmem:[#allocation4 + $0x24] sm:$0xf]
    %v299 = vld [vmem:[#allocation4 + $0x28] sm:$0xf]
    %v300 = vld [vmem:[#allocation4 + $0x2c] sm:$0xf]
    %v301 = vld [vmem:[#allocation4 + $0x30] sm:$0xf]
    %v302 = vld [vmem:[#allocation4 + $0x34] sm:$0xf]
    %v303 = vld [vmem:[#allocation4 + $0x38] sm:$0xf]
    %v304 = vld [vmem:[#allocation4 + $0x3c] sm:$0xf]
    %v305 = vld [vmem:[%s8] sm:$0x1]
    %v307 = vperm.slane %v305, 0
    %v325 = vunpack.c.l.b16 %v289
    %v326 = vunpack.c.l.b16 %v290
    %v327 = vunpack.c.l.b16 %v291
    %v328 = vunpack.c.l.b16 %v292
    %v329 = vunpack.c.l.b16 %v293
    %v330 = vunpack.c.l.b16 %v294
    %v331 = vunpack.c.l.b16 %v295
    %v332 = vunpack.c.l.b16 %v296
    %v333 = vunpack.c.l.b16 %v297
    %v334 = vunpack.c.l.b16 %v298
    %v335 = vunpack.c.l.b16 %v299
    %v336 = vunpack.c.l.b16 %v300
    %v337 = vunpack.c.l.b16 %v301
    %v338 = vunpack.c.l.b16 %v302
    %v339 = vunpack.c.l.b16 %v303
    %v340 = vunpack.c.l.b16 %v304
    %v341 = vpack.c.b16 %v326, %v325
    %v342 = vpack.c.b16 %v328, %v327
    %v343 = vpack.c.b16 %v330, %v329
    %v344 = vpack.c.b16 %v332, %v331
    %v345 = vpack.c.b16 %v334, %v333
    %v346 = vpack.c.b16 %v336, %v335
    %v347 = vpack.c.b16 %v338, %v337
    %v348 = vpack.c.b16 %v340, %v339
    %357 = vmatpush.bf16.msra.mxu0 %v348
    %358 = vmatpush.bf16.msra.mxu0 %v347
    %359 = vmatpush.bf16.msra.mxu0 %v346
    %360 = vmatpush.bf16.msra.mxu0 %v345
    %361 = vmatpush.bf16.msra.mxu0 %v344
    %362 = vmatpush.bf16.msra.mxu0 %v343
    %363 = vmatpush.bf16.msra.mxu0 %v342
    %364 = vmatpush.bf16.msra.mxu0 %v341
    %365 = vmatmul.bf16.gmra.mxu0 %v288
    %v366 = vpop.f32.mrf.mxu0
    %v367 = vadd.f32 %v307, %v366
    %v368 = vpop.f32.mrf.mxu0
    %v369 = vadd.f32 %v307, %v368
    %370 = vdwg.mxu0
    %v371 = vmax.f32 %v367, 0.0
    %v372 = vmax.f32 %v369, 0.0
    %v373 = vpack.c.bf16 %v372, %v371
    %v374 = vld [vmem:[%s9] sm:$0xf]
    %v375 = vld [vmem:[%s9 + $0x4] sm:$0xf]
    %v376 = vld [vmem:[%s9 + $0x8] sm:$0xf]
    %v377 = vld [vmem:[%s9 + $0xc] sm:$0xf]
    %v378 = vld [vmem:[%s9 + $0x10] sm:$0xf]
    %v379 = vld [vmem:[%s9 + $0x14] sm:$0xf]
    %v380 = vld [vmem:[%s9 + $0x18] sm:$0xf]
    %v381 = vld [vmem:[%s9 + $0x1c] sm:$0xf]
    %v382 = vld [vmem:[%s9 + $0x20] sm:$0xf]
    %v383 = vld [vmem:[%s9 + $0x24] sm:$0xf]
    %v384 = vld [vmem:[%s9 + $0x28] sm:$0xf]
    %v385 = vld [vmem:[%s9 + $0x2c] sm:$0xf]
    %v386 = vld [vmem:[%s9 + $0x30] sm:$0xf]
    %v387 = vld [vmem:[%s9 + $0x34] sm:$0xf]
    %v388 = vld [vmem:[%s9 + $0x38] sm:$0xf]
    %v389 = vld [vmem:[%s9 + $0x3c] sm:$0xf]
    %v390 = vld [vmem:[%s10] sm:$0x1]
    %v392 = vperm.slane %v390, 0
    %v410 = vunpack.c.l.b16 %v374
    %v411 = vunpack.c.l.b16 %v375
    %v412 = vunpack.c.l.b16 %v376
    %v413 = vunpack.c.l.b16 %v377
    %v414 = vunpack.c.l.b16 %v378
    %v415 = vunpack.c.l.b16 %v379
    %v416 = vunpack.c.l.b16 %v380
    %v417 = vunpack.c.l.b16 %v381
    %v418 = vunpack.c.l.b16 %v382
    %v419 = vunpack.c.l.b16 %v383
    %v420 = vunpack.c.l.b16 %v384
    %v421 = vunpack.c.l.b16 %v385
    %v422 = vunpack.c.l.b16 %v386
    %v423 = vunpack.c.l.b16 %v387
    %v424 = vunpack.c.l.b16 %v388
    %v425 = vunpack.c.l.b16 %v389
    %v426 = vpack.c.b16 %v411, %v410
    %v427 = vpack.c.b16 %v413, %v412
    %v428 = vpack.c.b16 %v415, %v414
    %v429 = vpack.c.b16 %v417, %v416
    %v430 = vpack.c.b16 %v419, %v418
    %v431 = vpack.c.b16 %v421, %v420
    %v432 = vpack.c.b16 %v423, %v422
    %v433 = vpack.c.b16 %v425, %v424
    %442 = vmatpush.bf16.msra.mxu0 %v433
    %443 = vmatpush.bf16.msra.mxu0 %v432
    %444 = vmatpush.bf16.msra.mxu0 %v431
    %445 = vmatpush.bf16.msra.mxu0 %v430
    %446 = vmatpush.bf16.msra.mxu0 %v429
    %447 = vmatpush.bf16.msra.mxu0 %v428
    %448 = vmatpush.bf16.msra.mxu0 %v427
    %449 = vmatpush.bf16.msra.mxu0 %v426
    %450 = vmatmul.bf16.gmra.mxu0 %v373
    %v451 = vpop.f32.mrf.mxu0
    %v452 = vadd.f32 %v392, %v451
    %v453 = vpop.f32.mrf.mxu0
    %v454 = vadd.f32 %v392, %v453
    %455 = vdwg.mxu0
    %vm456 = vcmask 64512
    %457 = vst.msk [vmem:[%s11] sm:$0xff] %vm456, %v452
    %458 = vst.msk [vmem:[%s11 + $0x8] sm:$0xff] %vm456, %v454
    // Predicated region
    $region54: #{mlp_forward.1} parent=1 // pred_check
      _
    $region55: #{mlp_forward.1} parent=1 // pred_check_branch
      %460 = sbr.rel (0) target = $region57
    $region56: #{mlp_forward.1} parent=1 // pred_region
      _
    $region57: #{mlp_forward.1} parent=1 // pred_fallthru
      _
    // Predicated region
    $region58: #{mlp_forward.1} parent=1 // pred_check
      _
    $region59: #{mlp_forward.1} parent=1 // pred_check_branch
      %462 = sbr.rel (0) target = $region61
    $region60: #{mlp_forward.1} parent=1 // pred_region
      _
    $region61: #{mlp_forward.1} parent=1 // pred_fallthru
      _
    %463 = vsyncpa [#allocation3], 1
    %464 = vsyncpa [#allocation5], 1

</llo_original>
